<compile_context>
chip_gen: v5e
topology: v5e:2x2
jax: 0.10.0
libtpu: 0.0.40
codegen_flags: <defaults>
</compile_context>

<pallas_src>
import functools

import jax
import jax.numpy as jnp
from jax.experimental import pallas as pl
from jax.experimental.pallas import tpu as pltpu

C = 32
GROUPS = 8
EPS = 1e-5
COMPUTE_DTYPE = jnp.float32   # set to jnp.bfloat16 on v6e/v7x for ~2x traffic reduction


# ------------------------------- Pallas kernel ------------------------------ #

def _cat_block_kernel(x_ref, wbig_ref, bbig_ref, wcat_ref, bcat_ref, o_ref, *, BT, H, Wp):
    """BT batch images per grid step.

    x_ref    : (BT, H, W, C)   raw (un-pooled) channels-last images
    wbig_ref : (5*C, 3*C)      folded weights, K rows = [xp|x_w-1|x_w+1|x_h-1|x_h+1],
                               N cols = [g1 | g2 | res]
    bbig_ref : (1, 3*C)        folded biases [b_g1 | b_g2 | b_res]
    wcat_ref : (2*C, C)        folded concat 1x1 conv weight
    bcat_ref : (1, C)          folded concat bias
    o_ref    : (BT, H, Wp, C)
    """
    f32 = jnp.float32
    M = BT * H * Wp

    # --- fused MaxPool2d(kernel=(1,3), stride=(1,2)): 3 sublane-strided taps + max ---
    t0 = x_ref[:, :, pl.ds(0, Wp, stride=2), :]
    t1 = x_ref[:, :, pl.ds(1, Wp, stride=2), :]
    t2 = x_ref[:, :, pl.ds(2, Wp, stride=2), :]
    xp = jnp.maximum(jnp.maximum(t0, t1), t2)                     # (BT, H, Wp, C)

    # --- zero-padded 'same' shifts, built in-register per image (no pad scratch) ---
    zw = jnp.zeros((BT, H, 1, C), xp.dtype)
    x_wm = jnp.concatenate([zw, xp[:, :, :Wp - 1, :]], axis=2)    # x[.., w-1, :]
    x_wp = jnp.concatenate([xp[:, :, 1:, :], zw], axis=2)         # x[.., w+1, :]
    zh = jnp.zeros((BT, 1, Wp, C), xp.dtype)
    x_hm = jnp.concatenate([zh, xp[:, :H - 1, :, :]], axis=1)     # x[.., h-1, .., :]
    x_hp = jnp.concatenate([xp[:, 1:, :, :], zh], axis=1)         # x[.., h+1, .., :]

    # --- one wide MXU matmul: (M, 5C) @ (5C, 3C) -> [g1_pre | g2_pre | res] ---
    xb = jnp.concatenate([xp, x_wm, x_wp, x_hm, x_hp], axis=3).reshape(M, 5 * C)
    pre = jnp.dot(xb, wbig_ref[...], preferred_element_type=f32) + bbig_ref[...]

    g = jnp.maximum(pre[:, :2 * C], 0.0).astype(wcat_ref.dtype)   # ReLU(g1 | g2), (M, 64)
    res = pre[:, 2 * C:]                                          # residual branch

    out = (jnp.dot(g, wcat_ref[...], preferred_element_type=f32)
           + bcat_ref[...] + res)
    o_ref[...] = out.reshape(BT, H, Wp, C).astype(o_ref.dtype)


# ----------------------------- parameter folding ---------------------------- #

def _fold_bn(gamma, beta, mean, var):
    s = gamma / jnp.sqrt(var + EPS)
    return s, beta - mean * s


def _block_diag_taps(w):
    # w: (32 out, 4 in_local, 3 taps) grouped-conv weight -> (3, 32 in, 32 out)
    # block-diagonal matrices, one per spatial tap.
    out = jnp.zeros((3, C, C), jnp.float32)
    gsz = C // GROUPS
    for g in range(GROUPS):
        blk = w[g * gsz:(g + 1) * gsz]                  # (4 out_local, 4 in_local, 3)
        out = out.at[:, g * gsz:(g + 1) * gsz, g * gsz:(g + 1) * gsz].set(
            jnp.transpose(blk, (2, 1, 0)))              # [tap, in_local, out_local]
    return out


def _fold_params(p):
    s_res, t_res = _fold_bn(*p["bn_res"])
    s_g1, t_g1 = _fold_bn(*p["bn_g1"])
    s_g2, t_g2 = _fold_bn(*p["bn_g2"])
    s_cat, t_cat = _fold_bn(*p["bn_cat"])

    w_res = p["w_res"][:, :, 0, 0].T * s_res[None, :]                   # (32 in, 32 out)
    b_res = p["b_res"] * s_res + t_res

    wt1 = _block_diag_taps(p["w_g1"][:, :, 0, :]) * s_g1[None, None, :]  # (3, 32, 32)
    b_g1 = p["b_g1"] * s_g1 + t_g1
    wt2 = _block_diag_taps(p["w_g2"][:, :, :, 0]) * s_g2[None, None, :]
    b_g2 = p["b_g2"] * s_g2 + t_g2

    w_cat = p["w_cat"][:, :, 0, 0].T * s_cat[None, :]                   # (64 in, 32 out)
    b_cat = p["b_cat"] * s_cat + t_cat

    # Fused (5C, 3C) weight: K rows = [xp | x_w-1 | x_w+1 | x_h-1 | x_h+1],
    #                        N cols = [g1 | g2 | res].
    w_big = jnp.zeros((5 * C, 3 * C), jnp.float32)
    w_big = w_big.at[0:C, 0:C].set(wt1[1])               # center tap -> g1
    w_big = w_big.at[0:C, C:2 * C].set(wt2[1])           # center tap -> g2
    w_big = w_big.at[0:C, 2 * C:].set(w_res)             # center     -> res
    w_big = w_big.at[C:2 * C, 0:C].set(wt1[0])           # w-1 tap    -> g1
    w_big = w_big.at[2 * C:3 * C, 0:C].set(wt1[2])       # w+1 tap    -> g1
    w_big = w_big.at[3 * C:4 * C, C:2 * C].set(wt2[0])   # h-1 tap    -> g2
    w_big = w_big.at[4 * C:5 * C, C:2 * C].set(wt2[2])   # h+1 tap    -> g2

    b_big = jnp.concatenate([b_g1, b_g2, b_res]).reshape(1, 3 * C)

    return (w_big.astype(COMPUTE_DTYPE), b_big.astype(jnp.float32),
            w_cat.astype(COMPUTE_DTYPE), b_cat.reshape(1, C).astype(jnp.float32))


# --------------------------------- wrapper ---------------------------------- #

def cat_block_forward(x_nchw, p):
    B, Cin, H, W = x_nchw.shape
    assert Cin == C
    Wp = (W - 3) // 2 + 1        # MaxPool2d((1,3), stride (1,2)), no padding

    w_big, b_big, w_cat, b_cat = _fold_params(p)

    # Batch-tile: largest of {8,4,2,1} dividing B -> amortizes per-grid-step overhead
    # and fills the MXU M dimension (BT*H*Wp rows per matmul).
    BT = next(bt for bt in (8, 4, 2, 1) if B % bt == 0)

    # channels-last layout: every conv becomes an MXU matmul over the channel lanes.
    x_nhwc = jnp.transpose(x_nchw, (0, 2, 3, 1)).astype(COMPUTE_DTYPE)   # (B, H, W, C)

    y = pl.pallas_call(
        functools.partial(_cat_block_kernel, BT=BT, H=H, Wp=Wp),
        out_shape=jax.ShapeDtypeStruct((B, H, Wp, C), jnp.float32),
        grid=(B // BT,),
        in_specs=[
            pl.BlockSpec((BT, H, W, C), lambda b: (b, 0, 0, 0)),     # BT images / step
            pl.BlockSpec((5 * C, 3 * C), lambda b: (0, 0)),          # fused weights
            pl.BlockSpec((1, 3 * C), lambda b: (0, 0)),
            pl.BlockSpec((2 * C, C), lambda b: (0, 0)),
            pl.BlockSpec((1, C), lambda b: (0, 0)),
        ],
        out_specs=pl.BlockSpec((BT, H, Wp, C), lambda b: (b, 0, 0, 0)),
        compiler_params=pltpu.CompilerParams(dimension_semantics=("parallel",)),
    )(x_nhwc, w_big, b_big, w_cat, b_cat)

    return jnp.transpose(y, (0, 3, 1, 2))   # back to NCHW


# ------------------------- pure-JAX reference check -------------------------- #

def reference(x, p):
    def bn(z, bn_p):
        gamma, beta, mean, var = bn_p
        s = gamma / jnp.sqrt(var + EPS)
        return z * s[None, :, None, None] + (beta - mean * s)[None, :, None, None]

    def conv(z, w, b, padding, groups=1):
        out = jax.lax.conv_general_dilated(
            z, w, window_strides=(1, 1), padding=padding,
            dimension_numbers=("NCHW", "OIHW", "NCHW"),
            feature_group_count=groups, precision=jax.lax.Precision.HIGHEST)
        return out + b[None, :, None, None]

    xp = jax.lax.reduce_window(x, -jnp.inf, jax.lax.max,
                               (1, 1, 1, 3), (1, 1, 1, 2), "VALID")
    res = bn(conv(xp, p["w_res"], p["b_res"], ((0, 0), (0, 0))), p["bn_res"])
    g1 = jax.nn.relu(bn(conv(xp, p["w_g1"], p["b_g1"], ((0, 0), (1, 1)), groups=GROUPS),
                        p["bn_g1"]))
    g2 = jax.nn.relu(bn(conv(xp, p["w_g2"], p["b_g2"], ((1, 1), (0, 0)), groups=GROUPS),
                        p["bn_g2"]))
    cat = bn(conv(jnp.concatenate([g1, g2], axis=1),
                  p["w_cat"], p["b_cat"], ((0, 0), (0, 0))), p["bn_cat"])
    return res + cat


def make_params(key):
    ks = jax.random.split(key, 12)

    def bn_params(k):
        k1, k2, k3, k4 = jax.random.split(k, 4)
        return (1.0 + 0.2 * jax.random.normal(k1, (C,)),
                0.1 * jax.random.normal(k2, (C,)),
                0.2 * jax.random.normal(k3, (C,)),
                jax.random.uniform(k4, (C,), minval=0.5, maxval=1.5))

    p = {
        "w_g1": 0.2 * jax.random.normal(ks[0], (C, C // GROUPS, 1, 3)),
        "b_g1": 0.1 * jax.random.normal(ks[1], (C,)),
        "w_g2": 0.2 * jax.random.normal(ks[2], (C, C // GROUPS, 3, 1)),
        "b_g2": 0.1 * jax.random.normal(ks[3], (C,)),
        "w_res": 0.2 * jax.random.normal(ks[4], (C, C, 1, 1)),
        "b_res": 0.1 * jax.random.normal(ks[5], (C,)),
        "w_cat": 0.2 * jax.random.normal(ks[6], (C, 2 * C, 1, 1)),
        "b_cat": 0.1 * jax.random.normal(ks[7], (C,)),
        "bn_g1": bn_params(ks[8]),
        "bn_g2": bn_params(ks[9]),
        "bn_res": bn_params(ks[10]),
        "bn_cat": bn_params(ks[11]),
    }
    return jax.tree_util.tree_map(lambda a: a.astype(jnp.float32), p)


if __name__ == "__main__":
    key = jax.random.PRNGKey(0)
    kx, kp = jax.random.split(key)
    x = jax.random.normal(kx, (2, C, 8, 17), dtype=jnp.float32)   # NCHW, like PyTorch
    params = make_params(kp)

    y = jax.jit(cat_block_forward)(x, params)
    y = jax.block_until_ready(y)

    y_ref = reference(x, params)
    assert y.shape == y_ref.shape == (2, C, 8, 8)
    err = float(jnp.max(jnp.abs(y - y_ref)))
    assert err < 1e-2, f"max abs error vs reference: {err}"
    print("KERNEL_OK")
</pallas_src>

<mosaic_0001>
module attributes {stable_mosaic.version = 11 : i64} {
  func.func @_cat_block_kernel(%arg0: i32, %arg1: memref<2x8x17x32xf32, #tpu.memory_space<vmem>>, %arg2: memref<160x96xf32, #tpu.memory_space<vmem>>, %arg3: memref<1x96xf32, #tpu.memory_space<vmem>>, %arg4: memref<64x32xf32, #tpu.memory_space<vmem>>, %arg5: memref<1x32xf32, #tpu.memory_space<vmem>>, %arg6: memref<2x8x8x32xf32, #tpu.memory_space<vmem>>) attributes {dimension_semantics = [#tpu.dimension_semantics<parallel>], iteration_bounds = array<i64: 1>, scalar_prefetch = 0 : i64, scratch_operands = 0 : i64, tpu.core_type = #tpu.core_type<tc>, window_params = [{transform_indices = @transform_0, window_bounds = array<i64: 2, 8, 17, 32>}, {pipeline_mode = #tpu.pipeline_mode<synchronous>, transform_indices = @transform_1, window_bounds = array<i64: 160, 96>}, {pipeline_mode = #tpu.pipeline_mode<synchronous>, transform_indices = @transform_2, window_bounds = array<i64: 1, 96>}, {pipeline_mode = #tpu.pipeline_mode<synchronous>, transform_indices = @transform_3, window_bounds = array<i64: 64, 32>}, {pipeline_mode = #tpu.pipeline_mode<synchronous>, transform_indices = @transform_4, window_bounds = array<i64: 1, 32>}, {transform_indices = @transform_5, window_bounds = array<i64: 2, 8, 8, 32>}]} {
    %c0 = arith.constant 0 : index
    %c0_0 = arith.constant 0 : index
    %c0_1 = arith.constant 0 : index
    %c0_2 = arith.constant 0 : index
    %0 = tpu.strided_load %arg1[%c0, %c0_0, %c0_1, %c0_2] {strides = array<i32: 1, 1, 2, 1>} : memref<2x8x17x32xf32, #tpu.memory_space<vmem>>, vector<2x8x8x32xf32>
    %c0_3 = arith.constant 0 : index
    %c0_4 = arith.constant 0 : index
    %c1 = arith.constant 1 : index
    %c0_5 = arith.constant 0 : index
    %1 = tpu.strided_load %arg1[%c0_3, %c0_4, %c1, %c0_5] {strides = array<i32: 1, 1, 2, 1>} : memref<2x8x17x32xf32, #tpu.memory_space<vmem>>, vector<2x8x8x32xf32>
    %c0_6 = arith.constant 0 : index
    %c0_7 = arith.constant 0 : index
    %c2 = arith.constant 2 : index
    %c0_8 = arith.constant 0 : index
    %2 = tpu.strided_load %arg1[%c0_6, %c0_7, %c2, %c0_8] {strides = array<i32: 1, 1, 2, 1>} : memref<2x8x17x32xf32, #tpu.memory_space<vmem>>, vector<2x8x8x32xf32>
    %3 = arith.maximumf %0, %1 : vector<2x8x8x32xf32>
    %4 = arith.maximumf %3, %2 : vector<2x8x8x32xf32>
    %cst = arith.constant 0.000000e+00 : f32
    %5 = vector.broadcast %cst : f32 to vector<2x8x1x32xf32>
    %6 = vector.extract_strided_slice %4 {offsets = [0, 0, 0, 0], sizes = [2, 8, 7, 32], strides = [1, 1, 1, 1]} : vector<2x8x8x32xf32> to vector<2x8x7x32xf32>
    %7 = tpu.concatenate %5, %6 in 2 : vector<2x8x1x32xf32>, vector<2x8x7x32xf32> -> vector<2x8x8x32xf32>
    %8 = vector.extract_strided_slice %4 {offsets = [0, 0, 1, 0], sizes = [2, 8, 7, 32], strides = [1, 1, 1, 1]} : vector<2x8x8x32xf32> to vector<2x8x7x32xf32>
    %9 = tpu.concatenate %8, %5 in 2 : vector<2x8x7x32xf32>, vector<2x8x1x32xf32> -> vector<2x8x8x32xf32>
    %cst_9 = arith.constant 0.000000e+00 : f32
    %10 = vector.broadcast %cst_9 : f32 to vector<2x1x8x32xf32>
    %11 = vector.extract_strided_slice %4 {offsets = [0, 0, 0, 0], sizes = [2, 7, 8, 32], strides = [1, 1, 1, 1]} : vector<2x8x8x32xf32> to vector<2x7x8x32xf32>
    %12 = tpu.concatenate %10, %11 in 1 : vector<2x1x8x32xf32>, vector<2x7x8x32xf32> -> vector<2x8x8x32xf32>
    %13 = vector.extract_strided_slice %4 {offsets = [0, 1, 0, 0], sizes = [2, 7, 8, 32], strides = [1, 1, 1, 1]} : vector<2x8x8x32xf32> to vector<2x7x8x32xf32>
    %14 = tpu.concatenate %13, %10 in 1 : vector<2x7x8x32xf32>, vector<2x1x8x32xf32> -> vector<2x8x8x32xf32>
    %15 = tpu.concatenate %4, %7, %9, %12, %14 in 3 : vector<2x8x8x32xf32>, vector<2x8x8x32xf32>, vector<2x8x8x32xf32>, vector<2x8x8x32xf32>, vector<2x8x8x32xf32> -> vector<2x8x8x160xf32>
    %16 = vector.shape_cast %15 : vector<2x8x8x160xf32> to vector<128x160xf32>
    %c0_10 = arith.constant 0 : index
    %c0_11 = arith.constant 0 : index
    %17 = vector.load %arg2[%c0_10, %c0_11] : memref<160x96xf32, #tpu.memory_space<vmem>>, vector<160x96xf32>
    %cst_12 = arith.constant dense<0.000000e+00> : vector<128x96xf32>
    %18 = tpu.matmul %16, %17, %cst_12 {dimension_numbers = #tpu.dot_dimension_numbers<[1], [0], [0], [1], [0, 0, 1, 1], [], []>} : vector<128x160xf32>, vector<160x96xf32>, vector<128x96xf32> -> vector<128x96xf32>
    %c0_13 = arith.constant 0 : index
    %c0_14 = arith.constant 0 : index
    %19 = vector.load %arg3[%c0_13, %c0_14] : memref<1x96xf32, #tpu.memory_space<vmem>>, vector<1x96xf32>
    %20 = vector.broadcast %19 : vector<1x96xf32> to vector<128x96xf32>
    %21 = arith.addf %18, %20 : vector<128x96xf32>
    %22 = vector.extract_strided_slice %21 {offsets = [0, 0], sizes = [128, 64], strides = [1, 1]} : vector<128x96xf32> to vector<128x64xf32>
    %cst_15 = arith.constant 0.000000e+00 : f32
    %23 = vector.broadcast %cst_15 : f32 to vector<128x64xf32>
    %24 = arith.maximumf %22, %23 : vector<128x64xf32>
    %25 = vector.extract_strided_slice %21 {offsets = [0, 64], sizes = [128, 32], strides = [1, 1]} : vector<128x96xf32> to vector<128x32xf32>
    %c0_16 = arith.constant 0 : index
    %c0_17 = arith.constant 0 : index
    %26 = vector.load %arg4[%c0_16, %c0_17] : memref<64x32xf32, #tpu.memory_space<vmem>>, vector<64x32xf32>
    %cst_18 = arith.constant dense<0.000000e+00> : vector<128x32xf32>
    %27 = tpu.matmul %24, %26, %cst_18 {dimension_numbers = #tpu.dot_dimension_numbers<[1], [0], [0], [1], [0, 0, 1, 1], [], []>} : vector<128x64xf32>, vector<64x32xf32>, vector<128x32xf32> -> vector<128x32xf32>
    %c0_19 = arith.constant 0 : index
    %c0_20 = arith.constant 0 : index
    %28 = vector.load %arg5[%c0_19, %c0_20] : memref<1x32xf32, #tpu.memory_space<vmem>>, vector<1x32xf32>
    %29 = vector.broadcast %28 : vector<1x32xf32> to vector<128x32xf32>
    %30 = arith.addf %27, %29 : vector<128x32xf32>
    %31 = arith.addf %30, %25 : vector<128x32xf32>
    %32 = vector.shape_cast %31 : vector<128x32xf32> to vector<2x8x8x32xf32>
    %c0_21 = arith.constant 0 : index
    %c0_22 = arith.constant 0 : index
    %c0_23 = arith.constant 0 : index
    %c0_24 = arith.constant 0 : index
    %33 = vector.load %arg6[%c0_21, %c0_22, %c0_23, %c0_24] : memref<2x8x8x32xf32, #tpu.memory_space<vmem>>, vector<2x8x8x32xf32>
    tpu.vector_store %arg6[%c0_21, %c0_22, %c0_23, %c0_24], %32 {strides = array<i32>} : memref<2x8x8x32xf32, #tpu.memory_space<vmem>>, vector<2x8x8x32xf32>,
    return
  }
  func.func @transform_0(%arg0: i32) -> (i32, i32, i32, i32) {
    %c0_i32 = arith.constant 0 : i32
    %c0_i32_0 = arith.constant 0 : i32
    %c0_i32_1 = arith.constant 0 : i32
    %c0_i32_2 = arith.constant 0 : i32
    return %arg0, %c0_i32, %c0_i32_0, %c0_i32_1 : i32, i32, i32, i32
  }
  func.func @transform_1(%arg0: i32) -> (i32, i32) {
    %c0_i32 = arith.constant 0 : i32
    %c0_i32_0 = arith.constant 0 : i32
    %c0_i32_1 = arith.constant 0 : i32
    return %c0_i32, %c0_i32_0 : i32, i32
  }
  func.func @transform_2(%arg0: i32) -> (i32, i32) {
    %c0_i32 = arith.constant 0 : i32
    %c0_i32_0 = arith.constant 0 : i32
    %c0_i32_1 = arith.constant 0 : i32
    return %c0_i32, %c0_i32_0 : i32, i32
  }
  func.func @transform_3(%arg0: i32) -> (i32, i32) {
    %c0_i32 = arith.constant 0 : i32
    %c0_i32_0 = arith.constant 0 : i32
    %c0_i32_1 = arith.constant 0 : i32
    return %c0_i32, %c0_i32_0 : i32, i32
  }
  func.func @transform_4(%arg0: i32) -> (i32, i32) {
    %c0_i32 = arith.constant 0 : i32
    %c0_i32_0 = arith.constant 0 : i32
    %c0_i32_1 = arith.constant 0 : i32
    return %c0_i32, %c0_i32_0 : i32, i32
  }
  func.func @transform_5(%arg0: i32) -> (i32, i32, i32, i32) {
    %c0_i32 = arith.constant 0 : i32
    %c0_i32_0 = arith.constant 0 : i32
    %c0_i32_1 = arith.constant 0 : i32
    %c0_i32_2 = arith.constant 0 : i32
    return %arg0, %c0_i32, %c0_i32_0, %c0_i32_1 : i32, i32, i32, i32
  }
}

</mosaic_0001>

<llo_original>
// kernel: cat_block_forward.1
$region0: #{cat_block_forward.1}
  #allocation0 [shape = 'u32[]', space=smem, size = 0x4, offset = 0x4, fixed_abs, tag = 'smem constant byte address 0x4 - core index']
  #allocation1 [shape = 'u32[72,128]{1,0:T(1,128)}', space=vmem, size = 0x9000, scoped, tag = 'internal scratch']
  %s0 = inlined_call_operand.vmem [shape: f32[2,8,17,32], index: 0, kind: input, shape index: {}]
  %s1 = inlined_call_operand.vmem [shape: f32[160,96], index: 1, kind: input, shape index: {}]
  %s2 = inlined_call_operand.vmem [shape: f32[1,96], index: 2, kind: input, shape index: {}]
  %s3 = inlined_call_operand.vmem [shape: f32[64,32], index: 3, kind: input, shape index: {}]
  %s4 = inlined_call_operand.vmem [shape: f32[1,32], index: 4, kind: input, shape index: {}]
  %s5 = inlined_call_operand.hbm [shape: f32[2,8,8,32], index: 5, kind: output, shape index: {}]
  %s6 = sld [smem:[#allocation0]]
  $region30: #{cat_block_forward.1} parent=0
    _
  %s8 = ssub.s32 1, %s6
  %s9 = scalar_select 0, %s8, %s6
  $region1: #{cat_block_forward.1} parent=0
    #allocation2 [shape = 'u8[65536]{0}', space=vmem, size = 0x10000, scoped, tag = 'output window, operand 0, single buffered']
    #allocation3 [shape = 's32[1]{0}', space=sflag, size = 0x4, scoped, tag = 'scoped memory for cat_block_forward.1']
    %10 = vsyncpa [#allocation3], 0
    // Predicated region
    $region2: #{cat_block_forward.1} parent=1 // pred_check
      _
    $region3: #{cat_block_forward.1} parent=1 // pred_check_branch
      %12 = sbr.rel (0) target = $region5
    $region4: #{cat_block_forward.1} parent=1 // pred_region
      _
    $region5: #{cat_block_forward.1} parent=1 // pred_fallthru
      _
    // Predicated region
    $region6: #{cat_block_forward.1} parent=1 // pred_check
      _
    $region7: #{cat_block_forward.1} parent=1 // pred_check_branch
      %14 = sbr.rel (0) target = $region9
    $region8: #{cat_block_forward.1} parent=1 // pred_region
      _
    $region9: #{cat_block_forward.1} parent=1 // pred_fallthru
      _
    // Predicated region
    $region10: #{cat_block_forward.1} parent=1 // pred_check
      _
    $region11: #{cat_block_forward.1} parent=1 // pred_check_branch
      %16 = sbr.rel (0) target = $region13
    $region12: #{cat_block_forward.1} parent=1 // pred_region
      _
    $region13: #{cat_block_forward.1} parent=1 // pred_fallthru
      _
    // Predicated region
    $region14: #{cat_block_forward.1} parent=1 // pred_check
      _
    $region15: #{cat_block_forward.1} parent=1 // pred_check_branch
      %18 = sbr.rel (0) target = $region17
    $region16: #{cat_block_forward.1} parent=1 // pred_region
      _
    $region17: #{cat_block_forward.1} parent=1 // pred_fallthru
      _
    // Predicated region
    $region18: #{cat_block_forward.1} parent=1 // pred_check
      _
    $region19: #{cat_block_forward.1} parent=1 // pred_check_branch
      %20 = sbr.rel (0) target = $region21
    $region20: #{cat_block_forward.1} parent=1 // pred_region
      _
    $region21: #{cat_block_forward.1} parent=1 // pred_fallthru
      _
    %v21 = vld [vmem:[%s0] ss:$2 sm:$0xff]
    %s22 = scalar_lea.vmem %s0, 24
    %v23 = vld [vmem:[%s22] ss:$2 sm:$0xff]
    %s24 = scalar_lea.vmem %s0, 48
    %v25 = vld [vmem:[%s24] ss:$2 sm:$0xff]
    %s26 = scalar_lea.vmem %s0, 72
    %v27 = vld [vmem:[%s26] ss:$2 sm:$0xff]
    %s28 = scalar_lea.vmem %s0, 96
    %v29 = vld [vmem:[%s28] ss:$2 sm:$0xff]
    %s30 = scalar_lea.vmem %s0, 120
    %v31 = vld [vmem:[%s30] ss:$2 sm:$0xff]
    %s32 = scalar_lea.vmem %s0, 144
    %v33 = vld [vmem:[%s32] ss:$2 sm:$0xff]
    %s34 = scalar_lea.vmem %s0, 168
    %v35 = vld [vmem:[%s34] ss:$2 sm:$0xff]
    %s36 = scalar_lea.vmem %s0, 192
    %v37 = vld [vmem:[%s36] ss:$2 sm:$0xff]
    %s38 = scalar_lea.vmem %s0, 216
    %v39 = vld [vmem:[%s38] ss:$2 sm:$0xff]
    %s40 = scalar_lea.vmem %s0, 240
    %v41 = vld [vmem:[%s40] ss:$2 sm:$0xff]
    %s42 = scalar_lea.vmem %s0, 264
    %v43 = vld [vmem:[%s42] ss:$2 sm:$0xff]
    %s44 = scalar_lea.vmem %s0, 288
    %v45 = vld [vmem:[%s44] ss:$2 sm:$0xff]
    %s46 = scalar_lea.vmem %s0, 312
    %v47 = vld [vmem:[%s46] ss:$2 sm:$0xff]
    %s48 = scalar_lea.vmem %s0, 336
    %v49 = vld [vmem:[%s48] ss:$2 sm:$0xff]
    %s50 = scalar_lea.vmem %s0, 360
    %v51 = vld [vmem:[%s50] ss:$2 sm:$0xff]
    %s52 = scalar_lea.vmem %s0, 1
    %v53 = vld [vmem:[%s52] ss:$2 sm:$0xff]
    %s54 = scalar_lea.vmem %s0, 25
    %v55 = vld [vmem:[%s54] ss:$2 sm:$0xff]
    %s56 = scalar_lea.vmem %s0, 49
    %v57 = vld [vmem:[%s56] ss:$2 sm:$0xff]
    %s58 = scalar_lea.vmem %s0, 73
    %v59 = vld [vmem:[%s58] ss:$2 sm:$0xff]
    %s60 = scalar_lea.vmem %s0, 97
    %v61 = vld [vmem:[%s60] ss:$2 sm:$0xff]
    %s62 = scalar_lea.vmem %s0, 121
    %v63 = vld [vmem:[%s62] ss:$2 sm:$0xff]
    %s64 = scalar_lea.vmem %s0, 145
    %v65 = vld [vmem:[%s64] ss:$2 sm:$0xff]
    %s66 = scalar_lea.vmem %s0, 169
    %v67 = vld [vmem:[%s66] ss:$2 sm:$0xff]
    %s68 = scalar_lea.vmem %s0, 193
    %v69 = vld [vmem:[%s68] ss:$2 sm:$0xff]
    %s70 = scalar_lea.vmem %s0, 217
    %v71 = vld [vmem:[%s70] ss:$2 sm:$0xff]
    %s72 = scalar_lea.vmem %s0, 241
    %v73 = vld [vmem:[%s72] ss:$2 sm:$0xff]
    %s74 = scalar_lea.vmem %s0, 265
    %v75 = vld [vmem:[%s74] ss:$2 sm:$0xff]
    %s76 = scalar_lea.vmem %s0, 289
    %v77 = vld [vmem:[%s76] ss:$2 sm:$0xff]
    %s78 = scalar_lea.vmem %s0, 313
    %v79 = vld [vmem:[%s78] ss:$2 sm:$0xff]
    %s80 = scalar_lea.vmem %s0, 337
    %v81 = vld [vmem:[%s80] ss:$2 sm:$0xff]
    %s82 = scalar_lea.vmem %s0, 361
    %v83 = vld [vmem:[%s82] ss:$2 sm:$0xff]
    %s84 = scalar_lea.vmem %s0, 2
    %v85 = vld [vmem:[%s84] ss:$2 sm:$0xff]
    %s86 = scalar_lea.vmem %s0, 26
    %v87 = vld [vmem:[%s86] ss:$2 sm:$0xff]
    %s88 = scalar_lea.vmem %s0, 50
    %v89 = vld [vmem:[%s88] ss:$2 sm:$0xff]
    %s90 = scalar_lea.vmem %s0, 74
    %v91 = vld [vmem:[%s90] ss:$2 sm:$0xff]
    %s92 = scalar_lea.vmem %s0, 98
    %v93 = vld [vmem:[%s92] ss:$2 sm:$0xff]
    %s94 = scalar_lea.vmem %s0, 122
    %v95 = vld [vmem:[%s94] ss:$2 sm:$0xff]
    %s96 = scalar_lea.vmem %s0, 146
    %v97 = vld [vmem:[%s96] ss:$2 sm:$0xff]
    %s98 = scalar_lea.vmem %s0, 170
    %v99 = vld [vmem:[%s98] ss:$2 sm:$0xff]
    %s100 = scalar_lea.vmem %s0, 194
    %v101 = vld [vmem:[%s100] ss:$2 sm:$0xff]
    %s102 = scalar_lea.vmem %s0, 218
    %v103 = vld [vmem:[%s102] ss:$2 sm:$0xff]
    %s104 = scalar_lea.vmem %s0, 242
    %v105 = vld [vmem:[%s104] ss:$2 sm:$0xff]
    %s106 = scalar_lea.vmem %s0, 266
    %v107 = vld [vmem:[%s106] ss:$2 sm:$0xff]
    %s108 = scalar_lea.vmem %s0, 290
    %v109 = vld [vmem:[%s108] ss:$2 sm:$0xff]
    %s110 = scalar_lea.vmem %s0, 314
    %v111 = vld [vmem:[%s110] ss:$2 sm:$0xff]
    %s112 = scalar_lea.vmem %s0, 338
    %v113 = vld [vmem:[%s112] ss:$2 sm:$0xff]
    %s114 = scalar_lea.vmem %s0, 362
    %v115 = vld [vmem:[%s114] ss:$2 sm:$0xff]
    %v116 = vmax.f32 %v21, %v53
    %v117 = vmax.f32 %v23, %v55
    %v118 = vmax.f32 %v25, %v57
    %v119 = vmax.f32 %v27, %v59
    %v120 = vmax.f32 %v29, %v61
    %v121 = vmax.f32 %v31, %v63
    %v122 = vmax.f32 %v33, %v65
    %v123 = vmax.f32 %v35, %v67
    %v124 = vmax.f32 %v37, %v69
    %v125 = vmax.f32 %v39, %v71
    %v126 = vmax.f32 %v41, %v73
    %v127 = vmax.f32 %v43, %v75
    %v128 = vmax.f32 %v45, %v77
    %v129 = vmax.f32 %v47, %v79
    %v130 = vmax.f32 %v49, %v81
    %v131 = vmax.f32 %v51, %v83
    %v132 = vmax.f32 %v116, %v85
    %v133 = vmax.f32 %v117, %v87
    %v134 = vmax.f32 %v118, %v89
    %v135 = vmax.f32 %v119, %v91
    %v136 = vmax.f32 %v120, %v93
    %v137 = vmax.f32 %v121, %v95
    %v138 = vmax.f32 %v122, %v97
    %v139 = vmax.f32 %v123, %v99
    %v140 = vmax.f32 %v124, %v101
    %v141 = vmax.f32 %v125, %v103
    %v142 = vmax.f32 %v126, %v105
    %v143 = vmax.f32 %v127, %v107
    %v144 = vmax.f32 %v128, %v109
    %v145 = vmax.f32 %v129, %v111
    %v146 = vmax.f32 %v130, %v113
    %v147 = vmax.f32 %v131, %v115
    %v164 = vrot.slane %v132, 7
    %v165 = vrot.slane %v133, 7
    %v166 = vrot.slane %v134, 7
    %v167 = vrot.slane %v135, 7
    %v168 = vrot.slane %v136, 7
    %v169 = vrot.slane %v137, 7
    %v170 = vrot.slane %v138, 7
    %v171 = vrot.slane %v139, 7
    %v172 = vrot.slane %v140, 7
    %v173 = vrot.slane %v141, 7
    %v174 = vrot.slane %v142, 7
    %v175 = vrot.slane %v143, 7
    %v176 = vrot.slane %v144, 7
    %v177 = vrot.slane %v145, 7
    %v178 = vrot.slane %v146, 7
    %v179 = vrot.slane %v147, 7
    %vm196 = vcmask 1040384
    %v197 = vsel %vm196, 0.0, %v164
    %v198 = vsel %vm196, 0.0, %v165
    %v199 = vsel %vm196, 0.0, %v166
    %v200 = vsel %vm196, 0.0, %v167
    %v201 = vsel %vm196, 0.0, %v168
    %v202 = vsel %vm196, 0.0, %v169
    %v203 = vsel %vm196, 0.0, %v170
    %v204 = vsel %vm196, 0.0, %v171
    %v205 = vsel %vm196, 0.0, %v172
    %v206 = vsel %vm196, 0.0, %v173
    %v207 = vsel %vm196, 0.0, %v174
    %v208 = vsel %vm196, 0.0, %v175
    %v209 = vsel %vm196, 0.0, %v176
    %v210 = vsel %vm196, 0.0, %v177
    %v211 = vsel %vm196, 0.0, %v178
    %v212 = vsel %vm196, 0.0, %v179
    %v213 = vrot.slane %v132, 1
    %v214 = vrot.slane %v133, 1
    %v215 = vrot.slane %v134, 1
    %v216 = vrot.slane %v135, 1
    %v217 = vrot.slane %v136, 1
    %v218 = vrot.slane %v137, 1
    %v219 = vrot.slane %v138, 1
    %v220 = vrot.slane %v139, 1
    %v221 = vrot.slane %v140, 1
    %v222 = vrot.slane %v141, 1
    %v223 = vrot.slane %v142, 1
    %v224 = vrot.slane %v143, 1
    %v225 = vrot.slane %v144, 1
    %v226 = vrot.slane %v145, 1
    %v227 = vrot.slane %v146, 1
    %v228 = vrot.slane %v147, 1
    %vm245 = vcmask 1046528
    %v246 = vsel %vm245, %v213, 0.0
    %v247 = vsel %vm245, %v214, 0.0
    %v248 = vsel %vm245, %v215, 0.0
    %v249 = vsel %vm245, %v216, 0.0
    %v250 = vsel %vm245, %v217, 0.0
    %v251 = vsel %vm245, %v218, 0.0
    %v252 = vsel %vm245, %v219, 0.0
    %v253 = vsel %vm245, %v220, 0.0
    %v254 = vsel %vm245, %v221, 0.0
    %v255 = vsel %vm245, %v222, 0.0
    %v256 = vsel %vm245, %v223, 0.0
    %v257 = vsel %vm245, %v224, 0.0
    %v258 = vsel %vm245, %v225, 0.0
    %v259 = vsel %vm245, %v226, 0.0
    %v260 = vsel %vm245, %v227, 0.0
    %v261 = vsel %vm245, %v228, 0.0
    %278 = vrot.lane.b32.xlu0 %v197, 32
    %v279 = vpop.permute.xlu0 %278
    %280 = vrot.lane.b32.xlu0 %v198, 32
    %v281 = vpop.permute.xlu0 %280
    %282 = vrot.lane.b32.xlu0 %v199, 32
    %v283 = vpop.permute.xlu0 %282
    %284 = vrot.lane.b32.xlu0 %v200, 32
    %v285 = vpop.permute.xlu0 %284
    %286 = vrot.lane.b32.xlu0 %v201, 32
    %v287 = vpop.permute.xlu0 %286
    %288 = vrot.lane.b32.xlu0 %v202, 32
    %v289 = vpop.permute.xlu0 %288
    %290 = vrot.lane.b32.xlu0 %v203, 32
    %v291 = vpop.permute.xlu0 %290
    %292 = vrot.lane.b32.xlu0 %v204, 32
    %v293 = vpop.permute.xlu0 %292
    %294 = vrot.lane.b32.xlu0 %v205, 32
    %v295 = vpop.permute.xlu0 %294
    %296 = vrot.lane.b32.xlu0 %v206, 32
    %v297 = vpop.permute.xlu0 %296
    %298 = vrot.lane.b32.xlu0 %v207, 32
    %v299 = vpop.permute.xlu0 %298
    %300 = vrot.lane.b32.xlu0 %v208, 32
    %v301 = vpop.permute.xlu0 %300
    %302 = vrot.lane.b32.xlu0 %v209, 32
    %v303 = vpop.permute.xlu0 %302
    %304 = vrot.lane.b32.xlu0 %v210, 32
    %v305 = vpop.permute.xlu0 %304
    %306 = vrot.lane.b32.xlu0 %v211, 32
    %v307 = vpop.permute.xlu0 %306
    %308 = vrot.lane.b32.xlu0 %v212, 32
    %v309 = vpop.permute.xlu0 %308
    %342 = vrot.lane.b32.xlu0 %v246, 64
    %v343 = vpop.permute.xlu0 %342
    %344 = vrot.lane.b32.xlu0 %v247, 64
    %v345 = vpop.permute.xlu0 %344
    %346 = vrot.lane.b32.xlu0 %v248, 64
    %v347 = vpop.permute.xlu0 %346
    %348 = vrot.lane.b32.xlu0 %v249, 64
    %v349 = vpop.permute.xlu0 %348
    %350 = vrot.lane.b32.xlu0 %v250, 64
    %v351 = vpop.permute.xlu0 %350
    %352 = vrot.lane.b32.xlu0 %v251, 64
    %v353 = vpop.permute.xlu0 %352
    %354 = vrot.lane.b32.xlu0 %v252, 64
    %v355 = vpop.permute.xlu0 %354
    %356 = vrot.lane.b32.xlu0 %v253, 64
    %v357 = vpop.permute.xlu0 %356
    %358 = vrot.lane.b32.xlu0 %v254, 64
    %v359 = vpop.permute.xlu0 %358
    %360 = vrot.lane.b32.xlu0 %v255, 64
    %v361 = vpop.permute.xlu0 %360
    %362 = vrot.lane.b32.xlu0 %v256, 64
    %v363 = vpop.permute.xlu0 %362
    %364 = vrot.lane.b32.xlu0 %v257, 64
    %v365 = vpop.permute.xlu0 %364
    %366 = vrot.lane.b32.xlu0 %v258, 64
    %v367 = vpop.permute.xlu0 %366
    %368 = vrot.lane.b32.xlu0 %v259, 64
    %v369 = vpop.permute.xlu0 %368
    %370 = vrot.lane.b32.xlu0 %v260, 64
    %v371 = vpop.permute.xlu0 %370
    %372 = vrot.lane.b32.xlu0 %v261, 64
    %v373 = vpop.permute.xlu0 %372
    %391 = vrot.lane.b32.xlu0 0.0, 96
    %v392 = vpop.permute.xlu0 %391
    %393 = vrot.lane.b32.xlu0 %v132, 96
    %v394 = vpop.permute.xlu0 %393
    %395 = vrot.lane.b32.xlu0 %v133, 96
    %v396 = vpop.permute.xlu0 %395
    %397 = vrot.lane.b32.xlu0 %v134, 96
    %v398 = vpop.permute.xlu0 %397
    %399 = vrot.lane.b32.xlu0 %v135, 96
    %v400 = vpop.permute.xlu0 %399
    %401 = vrot.lane.b32.xlu0 %v136, 96
    %v402 = vpop.permute.xlu0 %401
    %403 = vrot.lane.b32.xlu0 %v137, 96
    %v404 = vpop.permute.xlu0 %403
    %405 = vrot.lane.b32.xlu0 %v138, 96
    %v406 = vpop.permute.xlu0 %405
    %407 = vrot.lane.b32.xlu0 %v140, 96
    %v408 = vpop.permute.xlu0 %407
    %409 = vrot.lane.b32.xlu0 %v141, 96
    %v410 = vpop.permute.xlu0 %409
    %411 = vrot.lane.b32.xlu0 %v142, 96
    %v412 = vpop.permute.xlu0 %411
    %413 = vrot.lane.b32.xlu0 %v143, 96
    %v414 = vpop.permute.xlu0 %413
    %415 = vrot.lane.b32.xlu0 %v144, 96
    %v416 = vpop.permute.xlu0 %415
    %417 = vrot.lane.b32.xlu0 %v145, 96
    %v418 = vpop.permute.xlu0 %417
    %419 = vrot.lane.b32.xlu0 %v146, 96
    %v420 = vpop.permute.xlu0 %419
    %vm436 = vcmask 261120
    %v437 = vsel %vm436, %v132, %v279
    %v438 = vsel %vm436, %v133, %v281
    %v439 = vsel %vm436, %v134, %v283
    %v440 = vsel %vm436, %v135, %v285
    %v441 = vsel %vm436, %v136, %v287
    %v442 = vsel %vm436, %v137, %v289
    %v443 = vsel %vm436, %v138, %v291
    %v444 = vsel %vm436, %v139, %v293
    %v445 = vsel %vm436, %v140, %v295
    %v446 = vsel %vm436, %v141, %v297
    %v447 = vsel %vm436, %v142, %v299
    %v448 = vsel %vm436, %v143, %v301
    %v449 = vsel %vm436, %v144, %v303
    %v450 = vsel %vm436, %v145, %v305
    %v451 = vsel %vm436, %v146, %v307
    %v452 = vsel %vm436, %v147, %v309
    %vm453 = vcmask 523264
    %v454 = vsel %vm453, %v437, %v343
    %v455 = vsel %vm453, %v438, %v345
    %v456 = vsel %vm453, %v439, %v347
    %v457 = vsel %vm453, %v440, %v349
    %v458 = vsel %vm453, %v441, %v351
    %v459 = vsel %vm453, %v442, %v353
    %v460 = vsel %vm453, %v443, %v355
    %v461 = vsel %vm453, %v444, %v357
    %v462 = vsel %vm453, %v445, %v359
    %v463 = vsel %vm453, %v446, %v361
    %v464 = vsel %vm453, %v447, %v363
    %v465 = vsel %vm453, %v448, %v365
    %v466 = vsel %vm453, %v449, %v367
    %v467 = vsel %vm453, %v450, %v369
    %v468 = vsel %vm453, %v451, %v371
    %v469 = vsel %vm453, %v452, %v373
    %vm470 = vcmask 785408
    %v471 = vsel %vm470, %v454, %v392
    %v472 = vsel %vm470, %v455, %v394
    %v473 = vsel %vm470, %v456, %v396
    %v474 = vsel %vm470, %v457, %v398
    %v475 = vsel %vm470, %v458, %v400
    %v476 = vsel %vm470, %v459, %v402
    %v477 = vsel %vm470, %v460, %v404
    %v478 = vsel %vm470, %v461, %v406
    %v479 = vsel %vm470, %v462, %v392
    %v480 = vsel %vm470, %v463, %v408
    %v481 = vsel %vm470, %v464, %v410
    %v482 = vsel %vm470, %v465, %v412
    %v483 = vsel %vm470, %v466, %v414
    %v484 = vsel %vm470, %v467, %v416
    %v485 = vsel %vm470, %v468, %v418
    %v486 = vsel %vm470, %v469, %v420
    %v487 = vld [vmem:[%s1] sm:$0xff]
    %v488 = vld [vmem:[%s1 + $0x8] sm:$0xff]
    %v489 = vld [vmem:[%s1 + $0x10] sm:$0xff]
    %v490 = vld [vmem:[%s1 + $0x18] sm:$0xff]
    %v491 = vld [vmem:[%s1 + $0x20] sm:$0xff]
    %v492 = vld [vmem:[%s1 + $0x28] sm:$0xff]
    %v493 = vld [vmem:[%s1 + $0x30] sm:$0xff]
    %v494 = vld [vmem:[%s1 + $0x38] sm:$0xff]
    %v495 = vld [vmem:[%s1 + $0x40] sm:$0xff]
    %v496 = vld [vmem:[%s1 + $0x48] sm:$0xff]
    %v497 = vld [vmem:[%s1 + $0x50] sm:$0xff]
    %v498 = vld [vmem:[%s1 + $0x58] sm:$0xff]
    %v499 = vld [vmem:[%s1 + $0x60] sm:$0xff]
    %v500 = vld [vmem:[%s1 + $0x68] sm:$0xff]
    %v501 = vld [vmem:[%s1 + $0x70] sm:$0xff]
    %v502 = vld [vmem:[%s1 + $0x78] sm:$0xff]
    %v503 = vld [vmem:[%s1 + $0x80] sm:$0xff]
    %v504 = vld [vmem:[%s1 + $0x88] sm:$0xff]
    %v505 = vld [vmem:[%s1 + $0x90] sm:$0xff]
    %v506 = vld [vmem:[%s1 + $0x98] sm:$0xff]
    %v507 = vld [vmem:[%s2] sm:$0x1]
    %v509 = vperm.slane %v507, 0
    %v511 = vsel %vm436, %v133, 0
    %v513 = vsel %vm436, %v134, 0
    %v515 = vsel %vm436, %v135, 0
    %v517 = vsel %vm436, %v136, 0
    %v519 = vsel %vm436, %v137, 0
    %v521 = vsel %vm436, %v138, 0
    %v523 = vsel %vm436, %v139, 0
    %v525 = vsel %vm436, 0.0, 0
    %v527 = vsel %vm436, %v141, 0
    %v529 = vsel %vm436, %v142, 0
    %v531 = vsel %vm436, %v143, 0
    %v533 = vsel %vm436, %v144, 0
    %v535 = vsel %vm436, %v145, 0
    %v537 = vsel %vm436, %v146, 0
    %v539 = vsel %vm436, %v147, 0
    %541 = vmatpush.msra.mxu0 %v502
    %542 = vmatpush.msra.mxu0 %v501
    %543 = vmatpush.msra.mxu0 %v500
    %544 = vmatpush.msra.mxu0 %v499
    %545 = vmatpush.msra.mxu0 %v498
    %546 = vmatpush.msra.mxu0 %v497
    %547 = vmatpush.msra.mxu0 %v496
    %548 = vmatpush.msra.mxu0 %v495
    %549 = vmatpush.msra.mxu0 %v494
    %550 = vmatpush.msra.mxu0 %v493
    %551 = vmatpush.msra.mxu0 %v492
    %552 = vmatpush.msra.mxu0 %v491
    %553 = vmatpush.msra.mxu0 %v490
    %554 = vmatpush.msra.mxu0 %v489
    %555 = vmatpush.msra.mxu0 %v488
    %556 = vmatpush.msra.mxu0 %v487
    %557 = vmatmul.f32.gmra.mxu0 %v471
    %v558 = vpop.f32.mrf.mxu0
    %v559 = vadd.f32 %v509, %v558
    %560 = vmatmul.f32.gmra.mxu0 %v472
    %v561 = vpop.f32.mrf.mxu0
    %v562 = vadd.f32 %v509, %v561
    %563 = vmatmul.f32.gmra.mxu0 %v473
    %v564 = vpop.f32.mrf.mxu0
    %v565 = vadd.f32 %v509, %v564
    %566 = vmatmul.f32.gmra.mxu0 %v474
    %v567 = vpop.f32.mrf.mxu0
    %v568 = vadd.f32 %v509, %v567
    %569 = vmatmul.f32.gmra.mxu0 %v475
    %v570 = vpop.f32.mrf.mxu0
    %v571 = vadd.f32 %v509, %v570
    %572 = vmatmul.f32.gmra.mxu0 %v476
    %v573 = vpop.f32.mrf.mxu0
    %v574 = vadd.f32 %v509, %v573
    %575 = vmatmul.f32.gmra.mxu0 %v477
    %v576 = vpop.f32.mrf.mxu0
    %v577 = vadd.f32 %v509, %v576
    %578 = vmatmul.f32.gmra.mxu0 %v478
    %v579 = vpop.f32.mrf.mxu0
    %v580 = vadd.f32 %v509, %v579
    %581 = vmatmul.f32.gmra.mxu0 %v479
    %v582 = vpop.f32.mrf.mxu0
    %v583 = vadd.f32 %v509, %v582
    %584 = vmatmul.f32.gmra.mxu0 %v480
    %v585 = vpop.f32.mrf.mxu0
    %v586 = vadd.f32 %v509, %v585
    %587 = vmatmul.f32.gmra.mxu0 %v481
    %v588 = vpop.f32.mrf.mxu0
    %v589 = vadd.f32 %v509, %v588
    %590 = vmatmul.f32.gmra.mxu0 %v482
    %v591 = vpop.f32.mrf.mxu0
    %v592 = vadd.f32 %v509, %v591
    %593 = vmatmul.f32.gmra.mxu0 %v483
    %v594 = vpop.f32.mrf.mxu0
    %v595 = vadd.f32 %v509, %v594
    %596 = vmatmul.f32.gmra.mxu0 %v484
    %v597 = vpop.f32.mrf.mxu0
    %v598 = vadd.f32 %v509, %v597
    %599 = vmatmul.f32.gmra.mxu0 %v485
    %v600 = vpop.f32.mrf.mxu0
    %v601 = vadd.f32 %v509, %v600
    %602 = vmatmul.f32.gmra.mxu0 %v486
    %v603 = vpop.f32.mrf.mxu0
    %v604 = vadd.f32 %v509, %v603
    %605 = vdwg.mxu0
    %606 = vmatpush.msra.mxu0 0.0
    %607 = vmatpush.msra.mxu0 0.0
    %608 = vmatpush.msra.mxu0 0.0
    %609 = vmatpush.msra.mxu0 0.0
    %610 = vmatpush.msra.mxu0 0.0
    %611 = vmatpush.msra.mxu0 0.0
    %612 = vmatpush.msra.mxu0 0.0
    %613 = vmatpush.msra.mxu0 0.0
    %614 = vmatpush.msra.mxu0 0.0
    %615 = vmatpush.msra.mxu0 0.0
    %616 = vmatpush.msra.mxu0 0.0
    %617 = vmatpush.msra.mxu0 0.0
    %618 = vmatpush.msra.mxu0 %v506
    %619 = vmatpush.msra.mxu0 %v505
    %620 = vmatpush.msra.mxu0 %v504
    %621 = vmatpush.msra.mxu0 %v503
    %622 = vmatmul.f32.gmra.mxu0 %v511
    %v623 = vpop.f32.mrf.mxu0
    %v624 = vadd.f32 %v559, %v623
    %625 = vmatmul.f32.gmra.mxu0 %v513
    %v626 = vpop.f32.mrf.mxu0
    %v627 = vadd.f32 %v562, %v626
    %628 = vmatmul.f32.gmra.mxu0 %v515
    %v629 = vpop.f32.mrf.mxu0
    %v630 = vadd.f32 %v565, %v629
    %631 = vmatmul.f32.gmra.mxu0 %v517
    %v632 = vpop.f32.mrf.mxu0
    %v633 = vadd.f32 %v568, %v632
    %634 = vmatmul.f32.gmra.mxu0 %v519
    %v635 = vpop.f32.mrf.mxu0
    %v636 = vadd.f32 %v571, %v635
    %637 = vmatmul.f32.gmra.mxu0 %v521
    %v638 = vpop.f32.mrf.mxu0
    %v639 = vadd.f32 %v574, %v638
    %640 = vmatmul.f32.gmra.mxu0 %v523
    %v641 = vpop.f32.mrf.mxu0
    %v642 = vadd.f32 %v577, %v641
    %643 = vmatmul.f32.gmra.mxu0 %v525
    %v644 = vpop.f32.mrf.mxu0
    %v645 = vadd.f32 %v580, %v644
    %646 = vmatmul.f32.gmra.mxu0 %v527
    %v647 = vpop.f32.mrf.mxu0
    %v648 = vadd.f32 %v583, %v647
    %649 = vmatmul.f32.gmra.mxu0 %v529
    %v650 = vpop.f32.mrf.mxu0
    %v651 = vadd.f32 %v586, %v650
    %652 = vmatmul.f32.gmra.mxu0 %v531
    %v653 = vpop.f32.mrf.mxu0
    %v654 = vadd.f32 %v589, %v653
    %655 = vmatmul.f32.gmra.mxu0 %v533
    %v656 = vpop.f32.mrf.mxu0
    %v657 = vadd.f32 %v592, %v656
    %658 = vmatmul.f32.gmra.mxu0 %v535
    %v659 = vpop.f32.mrf.mxu0
    %v660 = vadd.f32 %v595, %v659
    %661 = vmatmul.f32.gmra.mxu0 %v537
    %v662 = vpop.f32.mrf.mxu0
    %v663 = vadd.f32 %v598, %v662
    %664 = vmatmul.f32.gmra.mxu0 %v539
    %v665 = vpop.f32.mrf.mxu0
    %v666 = vadd.f32 %v601, %v665
    %667 = vmatmul.f32.gmra.mxu0 %v525
    %v668 = vpop.f32.mrf.mxu0
    %v669 = vadd.f32 %v604, %v668
    %670 = vdwg.mxu0
    %v671 = vmax.f32 %v624, 0.0
    %v672 = vmax.f32 %v627, 0.0
    %v673 = vmax.f32 %v630, 0.0
    %v674 = vmax.f32 %v633, 0.0
    %v675 = vmax.f32 %v636, 0.0
    %v676 = vmax.f32 %v639, 0.0
    %v677 = vmax.f32 %v642, 0.0
    %v678 = vmax.f32 %v645, 0.0
    %v679 = vmax.f32 %v648, 0.0
    %v680 = vmax.f32 %v651, 0.0
    %v681 = vmax.f32 %v654, 0.0
    %v682 = vmax.f32 %v657, 0.0
    %v683 = vmax.f32 %v660, 0.0
    %v684 = vmax.f32 %v663, 0.0
    %v685 = vmax.f32 %v666, 0.0
    %v686 = vmax.f32 %v669, 0.0
    %v687 = vld [vmem:[%s3] sm:$0xff]
    %v688 = vld [vmem:[%s3 + $0x8] sm:$0xff]
    %v689 = vld [vmem:[%s3 + $0x10] sm:$0xff]
    %v690 = vld [vmem:[%s3 + $0x18] sm:$0xff]
    %v691 = vld [vmem:[%s3 + $0x20] sm:$0xff]
    %v692 = vld [vmem:[%s3 + $0x28] sm:$0xff]
    %v693 = vld [vmem:[%s3 + $0x30] sm:$0xff]
    %v694 = vld [vmem:[%s3 + $0x38] sm:$0xff]
    %v695 = vld [vmem:[%s4] sm:$0x1]
    %v697 = vperm.slane %v695, 0
    %v700 = vsel %vm453, %v671, 0
    %v703 = vsel %vm453, %v672, 0
    %v706 = vsel %vm453, %v673, 0
    %v709 = vsel %vm453, %v674, 0
    %v712 = vsel %vm453, %v675, 0
    %v715 = vsel %vm453, %v676, 0
    %v718 = vsel %vm453, %v677, 0
    %v721 = vsel %vm453, %v678, 0
    %v724 = vsel %vm453, %v679, 0
    %v727 = vsel %vm453, %v680, 0
    %v730 = vsel %vm453, %v681, 0
    %v733 = vsel %vm453, %v682, 0
    %v736 = vsel %vm453, %v683, 0
    %v739 = vsel %vm453, %v684, 0
    %v742 = vsel %vm453, %v685, 0
    %v745 = vsel %vm453, %v686, 0
    %747 = vmatpush.msra.mxu0 0.0
    %748 = vmatpush.msra.mxu0 0.0
    %749 = vmatpush.msra.mxu0 0.0
    %750 = vmatpush.msra.mxu0 0.0
    %751 = vmatpush.msra.mxu0 0.0
    %752 = vmatpush.msra.mxu0 0.0
    %753 = vmatpush.msra.mxu0 0.0
    %754 = vmatpush.msra.mxu0 0.0
    %755 = vmatpush.msra.mxu0 %v694
    %756 = vmatpush.msra.mxu0 %v693
    %757 = vmatpush.msra.mxu0 %v692
    %758 = vmatpush.msra.mxu0 %v691
    %759 = vmatpush.msra.mxu0 %v690
    %760 = vmatpush.msra.mxu0 %v689
    %761 = vmatpush.msra.mxu0 %v688
    %762 = vmatpush.msra.mxu0 %v687
    %763 = vmatmul.f32.gmra.mxu0 %v700
    %v764 = vpop.f32.mrf.mxu0
    %v765 = vadd.f32 %v697, %v764
    %766 = vmatmul.f32.gmra.mxu0 %v703
    %v767 = vpop.f32.mrf.mxu0
    %v768 = vadd.f32 %v697, %v767
    %769 = vmatmul.f32.gmra.mxu0 %v706
    %v770 = vpop.f32.mrf.mxu0
    %v771 = vadd.f32 %v697, %v770
    %772 = vmatmul.f32.gmra.mxu0 %v709
    %v773 = vpop.f32.mrf.mxu0
    %v774 = vadd.f32 %v697, %v773
    %775 = vmatmul.f32.gmra.mxu0 %v712
    %v776 = vpop.f32.mrf.mxu0
    %v777 = vadd.f32 %v697, %v776
    %778 = vmatmul.f32.gmra.mxu0 %v715
    %v779 = vpop.f32.mrf.mxu0
    %v780 = vadd.f32 %v697, %v779
    %781 = vmatmul.f32.gmra.mxu0 %v718
    %v782 = vpop.f32.mrf.mxu0
    %v783 = vadd.f32 %v697, %v782
    %784 = vmatmul.f32.gmra.mxu0 %v721
    %v785 = vpop.f32.mrf.mxu0
    %v786 = vadd.f32 %v697, %v785
    %787 = vmatmul.f32.gmra.mxu0 %v724
    %v788 = vpop.f32.mrf.mxu0
    %v789 = vadd.f32 %v697, %v788
    %790 = vmatmul.f32.gmra.mxu0 %v727
    %v791 = vpop.f32.mrf.mxu0
    %v792 = vadd.f32 %v697, %v791
    %793 = vmatmul.f32.gmra.mxu0 %v730
    %v794 = vpop.f32.mrf.mxu0
    %v795 = vadd.f32 %v697, %v794
    %796 = vmatmul.f32.gmra.mxu0 %v733
    %v797 = vpop.f32.mrf.mxu0
    %v798 = vadd.f32 %v697, %v797
    %799 = vmatmul.f32.gmra.mxu0 %v736
    %v800 = vpop.f32.mrf.mxu0
    %v801 = vadd.f32 %v697, %v800
    %802 = vmatmul.f32.gmra.mxu0 %v739
    %v803 = vpop.f32.mrf.mxu0
    %v804 = vadd.f32 %v697, %v803
    %805 = vmatmul.f32.gmra.mxu0 %v742
    %v806 = vpop.f32.mrf.mxu0
    %v807 = vadd.f32 %v697, %v806
    %808 = vmatmul.f32.gmra.mxu0 %v745
    %v809 = vpop.f32.mrf.mxu0
    %v810 = vadd.f32 %v697, %v809
    %811 = vdwg.mxu0
    %828 = vrot.lane.b32.xlu0 %v624, 64
    %v829 = vpop.permute.xlu0 %828
    %830 = vrot.lane.b32.xlu0 %v627, 64
    %v831 = vpop.permute.xlu0 %830
    %832 = vrot.lane.b32.xlu0 %v630, 64
    %v833 = vpop.permute.xlu0 %832
    %834 = vrot.lane.b32.xlu0 %v633, 64
    %v835 = vpop.permute.xlu0 %834
    %836 = vrot.lane.b32.xlu0 %v636, 64
    %v837 = vpop.permute.xlu0 %836
    %838 = vrot.lane.b32.xlu0 %v639, 64
    %v839 = vpop.permute.xlu0 %838
    %840 = vrot.lane.b32.xlu0 %v642, 64
    %v841 = vpop.permute.xlu0 %840
    %842 = vrot.lane.b32.xlu0 %v645, 64
    %v843 = vpop.permute.xlu0 %842
    %844 = vrot.lane.b32.xlu0 %v648, 64
    %v845 = vpop.permute.xlu0 %844
    %846 = vrot.lane.b32.xlu0 %v651, 64
    %v847 = vpop.permute.xlu0 %846
    %848 = vrot.lane.b32.xlu0 %v654, 64
    %v849 = vpop.permute.xlu0 %848
    %850 = vrot.lane.b32.xlu0 %v657, 64
    %v851 = vpop.permute.xlu0 %850
    %852 = vrot.lane.b32.xlu0 %v660, 64
    %v853 = vpop.permute.xlu0 %852
    %854 = vrot.lane.b32.xlu0 %v663, 64
    %v855 = vpop.permute.xlu0 %854
    %856 = vrot.lane.b32.xlu0 %v666, 64
    %v857 = vpop.permute.xlu0 %856
    %858 = vrot.lane.b32.xlu0 %v669, 64
    %v859 = vpop.permute.xlu0 %858
    %v876 = vadd.f32 %v765, %v829
    %v877 = vadd.f32 %v768, %v831
    %v878 = vadd.f32 %v771, %v833
    %v879 = vadd.f32 %v774, %v835
    %v880 = vadd.f32 %v777, %v837
    %v881 = vadd.f32 %v780, %v839
    %v882 = vadd.f32 %v783, %v841
    %v883 = vadd.f32 %v786, %v843
    %v884 = vadd.f32 %v789, %v845
    %v885 = vadd.f32 %v792, %v847
    %v886 = vadd.f32 %v795, %v849
    %v887 = vadd.f32 %v798, %v851
    %v888 = vadd.f32 %v801, %v853
    %v889 = vadd.f32 %v804, %v855
    %v890 = vadd.f32 %v807, %v857
    %v891 = vadd.f32 %v810, %v859
    %892 = vst.msk [vmem:[#allocation2] sm:$0xff] %vm436, %v876
    %893 = vst.msk [vmem:[#allocation2 + $0x8] sm:$0xff] %vm436, %v877
    %894 = vst.msk [vmem:[#allocation2 + $0x10] sm:$0xff] %vm436, %v878
    %895 = vst.msk [vmem:[#allocation2 + $0x18] sm:$0xff] %vm436, %v879
    %896 = vst.msk [vmem:[#allocation2 + $0x20] sm:$0xff] %vm436, %v880
    %897 = vst.msk [vmem:[#allocation2 + $0x28] sm:$0xff] %vm436, %v881
    %898 = vst.msk [vmem:[#allocation2 + $0x30] sm:$0xff] %vm436, %v882
    %899 = vst.msk [vmem:[#allocation2 + $0x38] sm:$0xff] %vm436, %v883
    %900 = vst.msk [vmem:[#allocation2 + $0x40] sm:$0xff] %vm436, %v884
    %901 = vst.msk [vmem:[#allocation2 + $0x48] sm:$0xff] %vm436, %v885
    %902 = vst.msk [vmem:[#allocation2 + $0x50] sm:$0xff] %vm436, %v886
    %903 = vst.msk [vmem:[#allocation2 + $0x58] sm:$0xff] %vm436, %v887
    %904 = vst.msk [vmem:[#allocation2 + $0x60] sm:$0xff] %vm436, %v888
    %905 = vst.msk [vmem:[#allocation2 + $0x68] sm:$0xff] %vm436, %v889
    %906 = vst.msk [vmem:[#allocation2 + $0x70] sm:$0xff] %vm436, %v890
    %907 = vst.msk [vmem:[#allocation2 + $0x78] sm:$0xff] %vm436, %v891
    // Predicated region
    $region22: #{cat_block_forward.1} parent=1 // pred_check
      _
    $region23: #{cat_block_forward.1} parent=1 // pred_check_branch
      %909 = sbr.rel (0) target = $region25
    $region24: #{cat_block_forward.1} parent=1 // pred_region
      %911 = vsyncadd [#allocation3], 0
      %s912 = sshll.u32 [#allocation2], 4
      %s913 = int_to_ptr.vmem [resolvable:$true] %s912
      %s914 = sshll.u32 %s5, 4
      %s915 = int_to_ptr.hbm [resolvable:$true] %s914
      %920 = dma.vmem_to_hbm [thread:$0]  %s913, 2048, %s915, [#allocation3], 128, 128, 8
    $region25: #{cat_block_forward.1} parent=1 // pred_fallthru
      _
    // Predicated region
    $region26: #{cat_block_forward.1} parent=1 // pred_check
      _
    $region27: #{cat_block_forward.1} parent=1 // pred_check_branch
      %922 = sbr.rel (0) target = $region29
    $region28: #{cat_block_forward.1} parent=1 // pred_region
      %924 = dma.done [#allocation3], 2048
    $region29: #{cat_block_forward.1} parent=1 // pred_fallthru
      _
    %925 = vsyncpa [#allocation3], 1

</llo_original>
